<compile_context>
chip_gen: v7x
topology: tpu7x:2x2x1
jax: 0.10.0
libtpu: 0.0.40
codegen_flags: <defaults>
</compile_context>

<pallas_src>
import jax
import jax.numpy as jnp
from jax.experimental import pallas as pl
from jax.experimental.pallas import tpu as pltpu


def _gate_kernel_lanes(w_ref, b_ref, x_ref, o_ref):
    """Lane-dense layout. x_ref: (1, C, s, 128); w_ref: (C, 1, 128) f32."""
    x = x_ref[0]                                            # (C, s, 128)
    # f32 products (w is f32 -> promotion), VALU adds over C, no XLU.
    logits = jnp.sum(x * w_ref[...], axis=0)                # (s, 128) f32
    a = jax.nn.sigmoid(logits + b_ref[0, 0])                # (s, 128) gate (EUP)
    o_ref[0] = (x * a.astype(x.dtype)).astype(o_ref.dtype)  # broadcast over C


def _gate_kernel_flat(w_ref, b_ref, x_ref, o_ref):
    """Fallback flat layout. x_ref: (1, C, t); w_ref: (C, 1) f32."""
    x = x_ref[0]                                                 # (C, t)
    logits = jnp.sum(x * w_ref[...], axis=0, keepdims=True)      # (1, t) f32
    a = jax.nn.sigmoid(logits + b_ref[0, 0])                     # (1, t)
    o_ref[0] = (x * a.astype(x.dtype)).astype(o_ref.dtype)


def dense_gate(x, w, b, *, target_block_bytes=4 * 1024 * 1024):
    """x: (B, C, H, W); w: (1, C) 1x1-conv weight; b: (1,) bias -> (B, C, H, W)."""
    B, C, H, W = x.shape
    HW = H * W
    itemsize = jnp.dtype(x.dtype).itemsize

    wf = w.reshape(C).astype(jnp.float32)
    bf = b.reshape(1, 1).astype(jnp.float32)

    if HW % 128 == 0:
        # Preferred path: (B, C, S, 128) layout -> dense vregs even for tiny C,
        # channel reduce over axis 0 is pure VALU, unmasked lane-dense stores.
        S_total = HW // 128
        x_arg = x.reshape(B, C, S_total, 128)

        s_target = max(1, target_block_bytes // (C * 128 * itemsize))
        if s_target >= S_total:
            s = S_total                                   # full extent (always legal)
        else:
            s = min(S_total, max(8, (s_target // 8) * 8))  # multiple of 8
        # Keep enough grid steps so v7x's two TensorCores both get work.
        while s > 8 and s % 16 == 0 and B * pl.cdiv(S_total, s) < 8:
            s //= 2

        grid = (B, pl.cdiv(S_total, s))
        block_bytes = C * s * 128 * itemsize

        w_arg = jnp.broadcast_to(wf[:, None, None], (C, 1, 128))  # lane-dense, resident
        in_specs = [
            pl.BlockSpec((C, 1, 128), lambda bi, hi: (0, 0, 0)),           # weight
            pl.BlockSpec((1, 1), lambda bi, hi: (0, 0),
                         memory_space=pltpu.SMEM),                          # bias scalar
            pl.BlockSpec((1, C, s, 128), lambda bi, hi: (bi, 0, hi, 0)),   # x tile
        ]
        out_specs = pl.BlockSpec((1, C, s, 128), lambda bi, hi: (bi, 0, hi, 0))
        out_shape = jax.ShapeDtypeStruct((B, C, S_total, 128), x.dtype)
        kernel = _gate_kernel_lanes
    else:
        # Fallback: flat (B, C, HW), lane-tiled with cdiv partial last block
        # (OOB lanes feed a per-lane sigmoid only; OOB writes are masked).
        x_arg = x.reshape(B, C, HW)

        t_target = max(128, (target_block_bytes // (C * itemsize)) // 128 * 128)
        t = HW if t_target >= HW else t_target            # t == HW (full) or k*128
        while t > 128 and t % 256 == 0 and B * pl.cdiv(HW, t) < 8:
            t //= 2

        grid = (B, pl.cdiv(HW, t))
        block_bytes = C * t * itemsize

        w_arg = wf[:, None]                               # (C, 1), resident
        in_specs = [
            pl.BlockSpec((C, 1), lambda bi, hi: (0, 0)),                   # weight
            pl.BlockSpec((1, 1), lambda bi, hi: (0, 0),
                         memory_space=pltpu.SMEM),                          # bias scalar
            pl.BlockSpec((1, C, t), lambda bi, hi: (bi, 0, hi)),           # x tile
        ]
        out_specs = pl.BlockSpec((1, C, t), lambda bi, hi: (bi, 0, hi))
        out_shape = jax.ShapeDtypeStruct((B, C, HW), x.dtype)
        kernel = _gate_kernel_flat

    # 4 live buffers (in + out, double-buffered) + resident weight + headroom;
    # cap at 48 MiB so v7x (64 MiB physical VMEM) keeps compiler scratch room.
    vmem_limit = int(min(48 << 20,
                         max(16 << 20,
                             4 * block_bytes + C * 128 * 4 + (2 << 20))))

    out = pl.pallas_call(
        kernel,
        out_shape=out_shape,
        grid_spec=pltpu.PrefetchScalarGridSpec(
            num_scalar_prefetch=0,
            grid=grid,
            in_specs=in_specs,
            out_specs=out_specs,
        ),
        compiler_params=pltpu.CompilerParams(
            dimension_semantics=("parallel", "parallel"),
            vmem_limit_bytes=vmem_limit),
    )(w_arg, bf, x_arg)

    return out.reshape(B, C, H, W)


def dense_gate_ref(x, w, b):
    # plain-JAX reference of the PyTorch forward (groups=1)
    a = jax.nn.sigmoid(jnp.einsum("bchw,gc->bghw", x, w) + b[None, :, None, None])
    return x * a


if __name__ == "__main__":
    B, C, H, W = 2, 4, 16, 16          # out_channel=4, groups=1
    key = jax.random.PRNGKey(0)
    kx, kw, kb, kx2 = jax.random.split(key, 4)

    x = jax.random.normal(kx, (B, C, H, W), dtype=jnp.float32)
    # deterministic Conv2d(C, 1, kernel_size=1) parameters
    bound = 1.0 / jnp.sqrt(jnp.float32(C))
    w = jax.random.uniform(kw, (1, C), minval=-bound, maxval=bound,
                           dtype=jnp.float32)
    b = jax.random.uniform(kb, (1,), minval=-bound, maxval=bound,
                           dtype=jnp.float32)

    # Main path: H*W multiple of 128 -> lane-dense (S, 128) layout.
    y = dense_gate(x, w, b)
    y = jax.block_until_ready(y)
    y_ref = dense_gate_ref(x, w, b)
    assert y.shape == (B, C, H, W)
    assert jnp.allclose(y, y_ref, atol=1e-5, rtol=1e-5)

    # Fallback path: H*W not a multiple of 128, with a forced partial last
    # lane block (exercises cdiv partial tiles / masked writes).
    x2 = jax.random.normal(kx2, (B, C, 9, 20), dtype=jnp.float32)
    y2 = dense_gate(x2, w, b, target_block_bytes=2048)
    y2 = jax.block_until_ready(y2)
    y2_ref = dense_gate_ref(x2, w, b)
    assert y2.shape == x2.shape
    assert jnp.allclose(y2, y2_ref, atol=1e-5, rtol=1e-5)

    print("KERNEL_OK")
</pallas_src>

<mosaic_0001>
module attributes {stable_mosaic.version = 11 : i64} {
  func.func @_gate_kernel_lanes(%arg0: i32, %arg1: i32, %arg2: memref<4x1x128xf32, #tpu.memory_space<vmem>>, %arg3: memref<1x1xf32, #tpu.memory_space<smem>>, %arg4: memref<1x4x2x128xf32, #tpu.memory_space<vmem>>, %arg5: memref<1x4x2x128xf32, #tpu.memory_space<vmem>>) attributes {dimension_semantics = [#tpu.dimension_semantics<parallel>, #tpu.dimension_semantics<parallel>], iteration_bounds = array<i64: 2, 1>, scalar_prefetch = 0 : i64, scratch_operands = 0 : i64, tpu.core_type = #tpu.core_type<tc>, window_params = [{pipeline_mode = #tpu.pipeline_mode<synchronous>, transform_indices = @transform_0, window_bounds = array<i64: 4, 1, 128>}, {transform_indices = @transform_1, window_bounds = array<i64: 1, 1>}, {transform_indices = @transform_2, window_bounds = array<i64: 1, 4, 2, 128>}, {transform_indices = @transform_3, window_bounds = array<i64: 1, 4, 2, 128>}]} {
    %c0 = arith.constant 0 : index
    %c0_0 = arith.constant 0 : index
    %c0_1 = arith.constant 0 : index
    %c0_2 = arith.constant 0 : index
    %0 = vector.load %arg4[%c0, %c0_0, %c0_1, %c0_2] : memref<1x4x2x128xf32, #tpu.memory_space<vmem>>, vector<1x4x2x128xf32>
    %1 = vector.shape_cast %0 : vector<1x4x2x128xf32> to vector<4x2x128xf32>
    %c0_3 = arith.constant 0 : index
    %c0_4 = arith.constant 0 : index
    %c0_5 = arith.constant 0 : index
    %2 = vector.load %arg2[%c0_3, %c0_4, %c0_5] : memref<4x1x128xf32, #tpu.memory_space<vmem>>, vector<4x1x128xf32>
    %3 = vector.broadcast %2 : vector<4x1x128xf32> to vector<4x2x128xf32>
    %4 = arith.mulf %1, %3 : vector<4x2x128xf32>
    %cst = arith.constant dense<0.000000e+00> : vector<2x128xf32>
    %5 = vector.multi_reduction <add>, %4, %cst [0] : vector<4x2x128xf32> to vector<2x128xf32>
    %c0_6 = arith.constant 0 : index
    %c0_7 = arith.constant 0 : index
    %6 = memref.load %arg3[%c0_6, %c0_7] : memref<1x1xf32, #tpu.memory_space<smem>>
    %7 = vector.broadcast %6 : f32 to vector<2x128xf32>
    %8 = arith.addf %5, %7 : vector<2x128xf32>
    %9 = arith.negf %8 : vector<2x128xf32>
    %10 = math.exp %9 : vector<2x128xf32>
    %cst_8 = arith.constant 1.000000e+00 : f32
    %11 = vector.broadcast %cst_8 : f32 to vector<2x128xf32>
    %12 = arith.addf %11, %10 : vector<2x128xf32>
    %13 = arith.divf %11, %12 : vector<2x128xf32>
    %14 = vector.shape_cast %13 : vector<2x128xf32> to vector<1x2x128xf32>
    %15 = vector.broadcast %14 : vector<1x2x128xf32> to vector<4x2x128xf32>
    %16 = arith.mulf %1, %15 : vector<4x2x128xf32>
    %c0_9 = arith.constant 0 : index
    %c0_10 = arith.constant 0 : index
    %c0_11 = arith.constant 0 : index
    %c0_12 = arith.constant 0 : index
    %17 = vector.load %arg5[%c0_9, %c0_10, %c0_11, %c0_12] : memref<1x4x2x128xf32, #tpu.memory_space<vmem>>, vector<1x4x2x128xf32>
    %18 = vector.shape_cast %17 : vector<1x4x2x128xf32> to vector<4x2x128xf32>
    %19 = vector.shape_cast %16 : vector<4x2x128xf32> to vector<1x4x2x128xf32>
    tpu.vector_store %arg5[%c0_9, %c0_10, %c0_11, %c0_12], %19 {strides = array<i32>} : memref<1x4x2x128xf32, #tpu.memory_space<vmem>>, vector<1x4x2x128xf32>,
    return
  }
  func.func @transform_0(%arg0: i32, %arg1: i32) -> (i32, i32, i32) {
    %c0_i32 = arith.constant 0 : i32
    %c0_i32_0 = arith.constant 0 : i32
    %c0_i32_1 = arith.constant 0 : i32
    %c0_i32_2 = arith.constant 0 : i32
    return %c0_i32, %c0_i32_0, %c0_i32_1 : i32, i32, i32
  }
  func.func @transform_1(%arg0: i32, %arg1: i32) -> (i32, i32) {
    %c0_i32 = arith.constant 0 : i32
    %c0_i32_0 = arith.constant 0 : i32
    %c0_i32_1 = arith.constant 0 : i32
    return %c0_i32, %c0_i32_0 : i32, i32
  }
  func.func @transform_2(%arg0: i32, %arg1: i32) -> (i32, i32, i32, i32) {
    %c0_i32 = arith.constant 0 : i32
    %c0_i32_0 = arith.constant 0 : i32
    %c0_i32_1 = arith.constant 0 : i32
    return %arg0, %c0_i32, %arg1, %c0_i32_0 : i32, i32, i32, i32
  }
  func.func @transform_3(%arg0: i32, %arg1: i32) -> (i32, i32, i32, i32) {
    %c0_i32 = arith.constant 0 : i32
    %c0_i32_0 = arith.constant 0 : i32
    %c0_i32_1 = arith.constant 0 : i32
    return %arg0, %c0_i32, %arg1, %c0_i32_0 : i32, i32, i32, i32
  }
}

</mosaic_0001>

<llo_original>
// kernel: tpu_custom_call.1
$region0: #{tpu_custom_call.1}
  #allocation0 [shape = 'u32[]', space=smem, size = 0x4, offset = 0x4, fixed_abs, tag = 'smem constant byte address 0x4 - core index']
  #allocation1 [shape = 'u32[144,128]{1,0:T(1,128)}', space=vmem, size = 0x12000, scoped, tag = 'internal scratch']
  #allocation2 [shape = 'f32[1,1]{1,0:T(1,128)S(6)}', space=smem, size = 0x200, scoped, tag = 'scoped memory for tpu_custom_call.1']
  %s0 = inlined_call_operand.hbm [shape: f32[4,1,128], index: 0, kind: input, shape index: {}]
  %s1 = inlined_call_operand.<no memory space> [shape: f32[1,1], index: 1, kind: input, shape index: {}]
  %s2 = inlined_call_operand.hbm [shape: f32[2,4,2,128], index: 2, kind: input, shape index: {}]
  %s3 = inlined_call_operand.hbm [shape: f32[2,4,2,128], index: 3, kind: output, shape index: {}]
  %s4 = sld [smem:[#allocation0]]
  $region53: #{tpu_custom_call.1} parent=0
    _
  %s6 = ssub.s32 1, %s4
  %s7 = scalar_select 0, %s6, %s4
  %8 = sst [smem:[#allocation2]] %s1
  $region1: #{tpu_custom_call.1} parent=0
    #allocation3 [shape = 'u8[2048]{0}', space=vmem, size = 0x800, scoped, tag = 'input window, operand 0, single buffered']
    #allocation4 [shape = 's32[2]{0}', space=sflag, size = 0x8, scoped, tag = 'scoped memory for tpu_custom_call.1']
    #allocation5 [shape = 's32[2]{0}', space=sflag, size = 0x8, scoped, tag = 'scoped memory for tpu_custom_call.1']
    #allocation6 [shape = 'u8[8192]{0}', space=vmem, size = 0x2000, scoped, tag = 'input window, operand 2']
    #allocation7 [shape = 's32[2]{0}', space=sflag, size = 0x8, scoped, tag = 'scoped memory for tpu_custom_call.1']
    #allocation8 [shape = 'u8[8192]{0}', space=vmem, size = 0x2000, scoped, tag = 'output window, operand 0']
    %9 = vsyncpa [#allocation4], 0
    %10 = vsyncpa [#allocation7], 0
    %s11 = scalar_lea.sflag [#allocation7], 1
    %12 = vsyncpa %s11, 0
    %13 = vsyncpa [#allocation5], 0
    %s14 = scalar_lea.sflag [#allocation5], 1
    %15 = vsyncpa %s14, 0
    loop: start=0, step=1, limit=4
    $region2: #{tpu_custom_call.1} parent=1 // loop_pre_header
      _
    $region3: #{tpu_custom_call.1} parent=1 // loop_header
      %s17 = sphi 0, %s21
      %p18 = scmp.ge.s32.totalorder %s17, 4
      %s24 = sphi 0, %s36
      %s25 = sphi 0, %s32
      %s26 = sphi 0, %s24
      %s27 = sphi 0, %s25
      %s28 = sphi 0, %s26
      %s29 = sphi 0, %s27
      %s37 = sphi 0, %s37
      %s39 = sphi 0, %s37
      %s40 = sphi 0, %s39
      %s54 = sphi 0, %s40
      %s58 = sphi 0, %s58
      %s60 = sphi 0, %s58
      %s61 = sphi 0, %s60
      %s75 = sphi 0, %s61
      %s83 = sphi 0, %s85
      %s86 = sphi 0, %s83
      %s87 = sphi 0, %s86
      %s103 = sphi 0, %s87
      %s111 = sphi 0, %s113
      %s114 = sphi 0, %s111
      %s115 = sphi 0, %s114
      %s131 = sphi 0, %s115
    $region4: #{tpu_custom_call.1} parent=1 // loop_header_branch
      %20 = sbr.rel (%p18) target = $region8
    $region5: #{tpu_custom_call.1} parent=1 // loop_body
      %s22 = ssub.s32 %s17, 1
      %s23 = ssub.s32 %s17, 2
      %s30 = sadd.s32 1, %s25
      %p31 = scmp.ge.s32.totalorder %s30, 1
      %s32 = scalar_select %p31, 0, %s30
      %s33 = sadd.s32 1, %s24
      %s34 = scalar_select %p31, %s33, %s24
      %p35 = scmp.ge.s32.totalorder %s34, 2
      %s36 = scalar_select %p35, 0, %s34
      %s38 = sadd.s32 %s37, 1
      %p41 = scmp.eq.s32.totalorder %s17, 1
      %p42 = scmp.ne.s32.totalorder %s37, %s39
      %p43 = scmp.eq.s32.totalorder %s17, 0
      %p44 = por %p42, %p43
      %p45 = scmp.ne.s32.totalorder %s37, %s39
      %p46 = scmp.eq.s32.totalorder %s22, 1
      %p47 = por %p45, %p46
      %p48 = scmp.ne.s32.totalorder %s39, %s40
      %p49 = scmp.eq.s32.totalorder %s22, 0
      %p50 = por %p48, %p49
      %p51 = scmp.ne.s32.totalorder %s39, %s40
      %p52 = scmp.eq.s32.totalorder %s23, 1
      %p53 = por %p51, %p52
      %p55 = scmp.ne.s32.totalorder %s40, %s54
      %p56 = scmp.eq.s32.totalorder %s23, 0
      %p57 = por %p55, %p56
      %s59 = sadd.s32 %s58, 1
      %p62 = scmp.eq.s32.totalorder %s17, 1
      %p63 = scmp.ne.s32.totalorder %s58, %s60
      %p64 = scmp.eq.s32.totalorder %s17, 0
      %p65 = por %p63, %p64
      %p66 = scmp.ne.s32.totalorder %s58, %s60
      %p67 = scmp.eq.s32.totalorder %s22, 1
      %p68 = por %p66, %p67
      %p69 = scmp.ne.s32.totalorder %s60, %s61
      %p70 = scmp.eq.s32.totalorder %s22, 0
      %p71 = por %p69, %p70
      %p72 = scmp.ne.s32.totalorder %s60, %s61
      %p73 = scmp.eq.s32.totalorder %s23, 1
      %p74 = por %p72, %p73
      %p76 = scmp.ne.s32.totalorder %s61, %s75
      %p77 = scmp.eq.s32.totalorder %s23, 0
      %p78 = por %p76, %p77
      %s79 = ssub.s32 %s24, %s36
      %s80 = ssub.s32 %s25, %s32
      %s81 = sor.u32 %s79, %s80
      %p82 = scmp.eq.s32.totalorder %s81, 0
      %s84 = sadd.s32 %s83, 1
      %s85 = scalar_select %p82, %s83, %s84
      %p88 = pneg %p82
      %p89 = scmp.eq.s32.totalorder %s17, 1
      %p90 = por %p88, %p89
      %p91 = scmp.ne.s32.totalorder %s83, %s86
      %p92 = scmp.eq.s32.totalorder %s17, 0
      %p93 = por %p91, %p92
      %p94 = scmp.ne.s32.totalorder %s83, %s86
      %p95 = scmp.eq.s32.totalorder %s22, 1
      %p96 = por %p94, %p95
      %p97 = scmp.ne.s32.totalorder %s86, %s87
      %p98 = scmp.eq.s32.totalorder %s22, 0
      %p99 = por %p97, %p98
      %p100 = scmp.ne.s32.totalorder %s86, %s87
      %p101 = scmp.eq.s32.totalorder %s23, 1
      %p102 = por %p100, %p101
      %p104 = scmp.ne.s32.totalorder %s87, %s103
      %p105 = scmp.eq.s32.totalorder %s23, 0
      %p106 = por %p104, %p105
      %s107 = ssub.s32 %s24, %s36
      %s108 = ssub.s32 %s25, %s32
      %s109 = sor.u32 %s107, %s108
      %p110 = scmp.eq.s32.totalorder %s109, 0
      %s112 = sadd.s32 %s111, 1
      %s113 = scalar_select %p110, %s111, %s112
      %p116 = pneg %p110
      %p117 = scmp.eq.s32.totalorder %s17, 1
      %p118 = por %p116, %p117
      %p119 = scmp.ne.s32.totalorder %s111, %s114
      %p120 = scmp.eq.s32.totalorder %s17, 0
      %p121 = por %p119, %p120
      %p122 = scmp.ne.s32.totalorder %s111, %s114
      %p123 = scmp.eq.s32.totalorder %s22, 1
      %p124 = por %p122, %p123
      %p125 = scmp.ne.s32.totalorder %s114, %s115
      %p126 = scmp.eq.s32.totalorder %s22, 0
      %p127 = por %p125, %p126
      %p128 = scmp.ne.s32.totalorder %s114, %s115
      %p129 = scmp.eq.s32.totalorder %s23, 1
      %p130 = por %p128, %p129
      %p132 = scmp.ne.s32.totalorder %s115, %s131
      %p133 = scmp.eq.s32.totalorder %s23, 0
      %p134 = por %p132, %p133
      %p135 = scmp.le.s32.totalorder 1, %s17
      %p136 = scmp.lt.s32.totalorder %s17, 3
      %p137 = pnand %p135, %p136
      %p138 = pneg %p137
      // Predicated region
      $region9: #{tpu_custom_call.1} parent=5 // pred_check
        _
      $region10: #{tpu_custom_call.1} parent=5 // pred_check_branch
        %140 = sbr.rel (%p137) target = $region12
      $region11: #{tpu_custom_call.1} parent=5 // pred_region
        %s141 = ssub.s32 %s17, 1
        // Predicated region
        $region13: #{tpu_custom_call.1} parent=11 // pred_check
          %p142 = pneg %p50
        $region14: #{tpu_custom_call.1} parent=11 // pred_check_branch
          %144 = sbr.rel (%p142) target = $region16
        $region15: #{tpu_custom_call.1} parent=11 // pred_region
          %s146 = ssub.s32 64, 64
          %147 = vsyncadd [#allocation4], %s146
          %s148 = sshll.u32 [#allocation3], 4
          %s149 = int_to_ptr.vmem [resolvable:$true] %s148
          %154 = dma.hbm_to_vmem [thread:$0]  %s0, 64, %s149, [#allocation4], 16, 16, 1
        $region16: #{tpu_custom_call.1} parent=11 // pred_fallthru
          _
        // Predicated region
        $region17: #{tpu_custom_call.1} parent=11 // pred_check
          %p155 = pneg %p71
        $region18: #{tpu_custom_call.1} parent=11 // pred_check_branch
          %157 = sbr.rel (%p155) target = $region20
        $region19: #{tpu_custom_call.1} parent=11 // pred_region
          _
        $region20: #{tpu_custom_call.1} parent=11 // pred_fallthru
          _
      $region12: #{tpu_custom_call.1} parent=5 // pred_fallthru
        _
      %p158 = scmp.lt.s32.totalorder %s17, 2
      // Predicated region
      $region21: #{tpu_custom_call.1} parent=5 // pred_check
        %p159 = pneg %p158
      $region22: #{tpu_custom_call.1} parent=5 // pred_check_branch
        %161 = sbr.rel (%p159) target = $region24
      $region23: #{tpu_custom_call.1} parent=5 // pred_region
        // Predicated region
        $region25: #{tpu_custom_call.1} parent=23 // pred_check
          %p162 = pneg %p93
        $region26: #{tpu_custom_call.1} parent=23 // pred_check_branch
          %164 = sbr.rel (%p162) target = $region28
        $region27: #{tpu_custom_call.1} parent=23 // pred_region
          %s165 = sand.u32 %s83, 1
          %s166 = scalar_lea.sflag [#allocation7], %s165
          %s167 = sand.u32 %s83, 1
          %s168 = smul.addr %s167, 8
          %s169 = scalar_lea.vmem [#allocation6], %s168
          %s171 = ssub.s32 128, 128
          %172 = vsyncadd %s166, %s171
          %s173 = smul.addr %s24, 4
          %s174 = sadd.s32 %s25, %s173
          %s175 = smul.addr %s174, 32
          %s176 = scalar_lea.hbm %s2, %s175
          %s177 = sshll.u32 %s169, 4
          %s178 = int_to_ptr.vmem [resolvable:$true] %s177
          %183 = dma.hbm_to_vmem [thread:$0]  %s176, 128, %s178, %s166, 32, 32, 2
        $region28: #{tpu_custom_call.1} parent=23 // pred_fallthru
          _
      $region24: #{tpu_custom_call.1} parent=5 // pred_fallthru
        _
      %p184 = scmp.le.s32.totalorder 1, %s17
      %p185 = scmp.lt.s32.totalorder %s17, 3
      %p186 = pnand %p184, %p185
      %p187 = pneg %p186
      // Predicated region
      $region29: #{tpu_custom_call.1} parent=5 // pred_check
        _
      $region30: #{tpu_custom_call.1} parent=5 // pred_check_branch
        %189 = sbr.rel (%p186) target = $region32
      $region31: #{tpu_custom_call.1} parent=5 // pred_region
        %s190 = ssub.s32 %s17, 1
        // Predicated region
        $region33: #{tpu_custom_call.1} parent=31 // pred_check
          %p191 = pneg %p50
        $region34: #{tpu_custom_call.1} parent=31 // pred_check_branch
          %193 = sbr.rel (%p191) target = $region36
        $region35: #{tpu_custom_call.1} parent=31 // pred_region
          %194 = dma.done [#allocation4], 64
        $region36: #{tpu_custom_call.1} parent=31 // pred_fallthru
          _
        %s195 = sand.u32 %s86, 1
        %s196 = scalar_lea.sflag [#allocation7], %s195
        %s197 = sand.u32 %s86, 1
        %s198 = smul.addr %s197, 8
        %s199 = scalar_lea.vmem [#allocation6], %s198
        // Predicated region
        $region37: #{tpu_custom_call.1} parent=31 // pred_check
          %p200 = pneg %p99
        $region38: #{tpu_custom_call.1} parent=31 // pred_check_branch
          %202 = sbr.rel (%p200) target = $region40
        $region39: #{tpu_custom_call.1} parent=31 // pred_region
          %203 = dma.done %s196, 128
        $region40: #{tpu_custom_call.1} parent=31 // pred_fallthru
          _
        %p204 = pneg %p50
        %p205 = pneg %p47
        %p206 = pneg %p71
        %p207 = pneg %p68
        %s208 = sand.u32 %s86, 1
        %s209 = scalar_lea.sflag [#allocation7], %s208
        %s210 = sand.u32 %s86, 1
        %s211 = smul.addr %s210, 8
        %s212 = scalar_lea.vmem [#allocation6], %s211
        %p213 = pneg %p99
        %p214 = pneg %p96
        %p215 = pneg %p127
        %p216 = pneg %p124
        %s217 = sand.u32 %s114, 1
        %s218 = scalar_lea.sflag [#allocation5], %s217
        %s219 = sand.u32 %s114, 1
        %s220 = smul.addr %s219, 8
        %s221 = scalar_lea.vmem [#allocation8], %s220
        %v222 = vld [vmem:[%s199] sm:$0x3]
        %v223 = vld [vmem:[%s199 + $0x2] sm:$0x3]
        %v224 = vld [vmem:[%s199 + $0x4] sm:$0x3]
        %v225 = vld [vmem:[%s199 + $0x6] sm:$0x3]
        %v226 = vld [vmem:[#allocation3] sm:$0x1]
        %v227 = vld [vmem:[#allocation3 + $0x1] sm:$0x1]
        %v228 = vld [vmem:[#allocation3 + $0x2] sm:$0x1]
        %v229 = vld [vmem:[#allocation3 + $0x3] sm:$0x1]
        %v234 = vlaneseq
        %v235 = vshrl.u32 %v234, 7
        %v236 = vsub.s32 0, %v235
        %v237 = vrot.slane %v226, %v236
        %v238 = vlaneseq
        %v239 = vshrl.u32 %v238, 7
        %v240 = vsub.s32 0, %v239
        %v241 = vrot.slane %v227, %v240
        %v242 = vlaneseq
        %v243 = vshrl.u32 %v242, 7
        %v244 = vsub.s32 0, %v243
        %v245 = vrot.slane %v228, %v244
        %v246 = vlaneseq
        %v247 = vshrl.u32 %v246, 7
        %v248 = vsub.s32 0, %v247
        %v249 = vrot.slane %v229, %v248
        %v254 = vmul.f32 %v222, %v237
        %v255 = vmul.f32 %v223, %v241
        %v256 = vmul.f32 %v224, %v245
        %v257 = vmul.f32 %v225, %v249
        %vm258 = vcmask 1041408
        %v259 = vsel %vm258, %v254, 0.0
        %v260 = vsel %vm258, %v255, 0.0
        %v261 = vadd.f32 %v259, %v260
        %v262 = vsel %vm258, %v256, 0.0
        %v263 = vadd.f32 %v261, %v262
        %v264 = vsel %vm258, %v257, 0.0
        %v265 = vadd.f32 %v263, %v264
        %s266 = sld [smem:[#allocation2]]
        %v267 = vstv %s266
        %v268 = vadd.f32 %v265, %v267
        %v269 = vxor.u32 %v268, 2147483648
        %v270 = vmul.f32 %v269, 1.442695
        %v271 = vpow.pop %v270
        %v272 = vadd.f32 %v271, 1.0
        %v273 = vrcp.pop %v272
        %v274 = vmul.f32 1.0, %v273
        %v275 = vmul.f32 %v222, %v274
        %v276 = vmul.f32 %v223, %v274
        %v277 = vmul.f32 %v224, %v274
        %v278 = vmul.f32 %v225, %v274
        %279 = vst [vmem:[%s221] sm:$0x3] %v275
        %280 = vst [vmem:[%s221 + $0x2] sm:$0x3] %v276
        %281 = vst [vmem:[%s221 + $0x4] sm:$0x3] %v277
        %282 = vst [vmem:[%s221 + $0x6] sm:$0x3] %v278
        %s283 = sand.u32 %s114, 1
        %s284 = scalar_lea.sflag [#allocation5], %s283
        %s285 = sand.u32 %s114, 1
        %s286 = smul.addr %s285, 8
        %s287 = scalar_lea.vmem [#allocation8], %s286
        // Predicated region
        $region41: #{tpu_custom_call.1} parent=31 // pred_check
          %p288 = pneg %p124
        $region42: #{tpu_custom_call.1} parent=31 // pred_check_branch
          %290 = sbr.rel (%p288) target = $region44
        $region43: #{tpu_custom_call.1} parent=31 // pred_region
          %s292 = ssub.s32 128, 128
          %293 = vsyncadd %s284, %s292
          %s294 = smul.addr %s26, 4
          %s295 = sadd.s32 %s27, %s294
          %s296 = smul.addr %s295, 32
          %s297 = scalar_lea.hbm %s3, %s296
          %s298 = sshll.u32 %s287, 4
          %s299 = int_to_ptr.vmem [resolvable:$true] %s298
          %304 = dma.vmem_to_hbm [thread:$0]  %s299, 128, %s297, %s284, 32, 32, 2
        $region44: #{tpu_custom_call.1} parent=31 // pred_fallthru
          _
      $region32: #{tpu_custom_call.1} parent=5 // pred_fallthru
        _
      %p305 = scmp.le.s32.totalorder 2, %s17
      // Predicated region
      $region45: #{tpu_custom_call.1} parent=5 // pred_check
        %p306 = pneg %p305
      $region46: #{tpu_custom_call.1} parent=5 // pred_check_branch
        %308 = sbr.rel (%p306) target = $region48
      $region47: #{tpu_custom_call.1} parent=5 // pred_region
        %s309 = ssub.s32 %s17, 2
        // Predicated region
        $region49: #{tpu_custom_call.1} parent=47 // pred_check
          %p310 = pneg %p130
        $region50: #{tpu_custom_call.1} parent=47 // pred_check_branch
          %312 = sbr.rel (%p310) target = $region52
        $region51: #{tpu_custom_call.1} parent=47 // pred_region
          %s313 = sand.u32 %s115, 1
          %s314 = scalar_lea.sflag [#allocation5], %s313
          %s315 = sand.u32 %s115, 1
          %s316 = smul.addr %s315, 8
          %s317 = scalar_lea.vmem [#allocation8], %s316
          %318 = dma.done %s314, 128
        $region52: #{tpu_custom_call.1} parent=47 // pred_fallthru
          _
      $region48: #{tpu_custom_call.1} parent=5 // pred_fallthru
        _
    $region6: #{tpu_custom_call.1} parent=1 // loop_footer
      %s21 = sadd.s32 1, %s17
    $region7: #{tpu_custom_call.1} parent=1 // loop_footer_branch
      %16 = sbr.rel target = $region3
    $region8: #{tpu_custom_call.1} parent=1 // loop_exit
      _
    %319 = vsyncpa [#allocation4], 1
    %s320 = scalar_lea.sflag [#allocation4], 1
    %321 = vsyncpa %s320, 1
    %322 = vsyncpa [#allocation7], 1
    %s323 = scalar_lea.sflag [#allocation7], 1
    %324 = vsyncpa %s323, 1
    %325 = vsyncpa [#allocation5], 1
    %s326 = scalar_lea.sflag [#allocation5], 1
    %327 = vsyncpa %s326, 1

</llo_original>
